<compile_context>
chip_gen: v6e
topology: v6e:2x2x1
jax: 0.10.0
libtpu: 0.0.40
codegen_flags: <defaults>
</compile_context>

<pallas_src>
import jax
import jax.numpy as jnp
from jax.experimental import pallas as pl
from jax.experimental.pallas import tpu as pltpu


def _round_up(x, m):
    return ((x + m - 1) // m) * m


def gcn_conv_kernel(a_ref, x_ref, w_ref, b_ref, o_ref, acc_ref):
    """One (row-tile i, contraction-tile k) step of out = A @ (X W) + b.

    a_ref  : (TM, TK) bf16   row/col tile of normalized adjacency
    x_ref  : (TK, Fp) bf16   rows of X matching this k-tile
    w_ref  : (Fp, Hp) bf16   full (padded) weight
    b_ref  : (1,  Hp) f32    bias
    o_ref  : (TM, Hp) f32    output row tile (written on last k step)
    acc_ref: (TM, Hp) f32    accumulator, persistent across the k axis
    """
    k = pl.program_id(1)

    @pl.when(k == 0)
    def _():
        acc_ref[...] = jnp.zeros_like(acc_ref)

    # XW slab for this k-tile: bf16 MXU matmul with f32 accumulation,
    # then cast down so the big A-matmul also runs as bf16 on the MXU.
    xw = jnp.dot(x_ref[...], w_ref[...], preferred_element_type=jnp.float32)
    acc_ref[...] += jnp.dot(
        a_ref[...], xw.astype(jnp.bfloat16), preferred_element_type=jnp.float32
    )

    @pl.when(k == pl.num_programs(1) - 1)
    def _():
        o_ref[...] = acc_ref[...] + b_ref[...]


def gcn_conv_pallas(a_norm, x, w, b, *, tm=256, tk=256):
    """out = a_norm @ (x @ w) + b  (f32 result, bf16 MXU inputs)."""
    N, F = x.shape
    H = w.shape[1]
    assert a_norm.shape == (N, N)
    assert b.shape == (1, H)

    n_rows = _round_up(N, tm)      # output rows padding
    n_cols = _round_up(N, tk)      # contraction padding
    f_pad = _round_up(F, 128)      # lane-dense reduction dim for X @ W
    h_pad = _round_up(H, 128)      # lane-dense output / weight columns

    a_p = jnp.pad(a_norm.astype(jnp.float32),
                  ((0, n_rows - N), (0, n_cols - N))).astype(jnp.bfloat16)
    x_p = jnp.pad(x.astype(jnp.float32),
                  ((0, n_cols - N), (0, f_pad - F))).astype(jnp.bfloat16)
    w_p = jnp.pad(w.astype(jnp.float32),
                  ((0, f_pad - F), (0, h_pad - H))).astype(jnp.bfloat16)
    b_p = jnp.pad(b.astype(jnp.float32), ((0, 0), (0, h_pad - H)))

    grid = (n_rows // tm, n_cols // tk)

    out_p = pl.pallas_call(
        gcn_conv_kernel,
        out_shape=jax.ShapeDtypeStruct((n_rows, h_pad), jnp.float32),
        grid_spec=pltpu.PrefetchScalarGridSpec(
            num_scalar_prefetch=0,
            grid=grid,
            in_specs=[
                pl.BlockSpec((tm, tk), lambda i, k: (i, k)),        # A tile
                pl.BlockSpec((tk, f_pad), lambda i, k: (k, 0)),     # X rows for k
                pl.BlockSpec((f_pad, h_pad), lambda i, k: (0, 0)),  # W (full)
                pl.BlockSpec((1, h_pad), lambda i, k: (0, 0)),      # bias
            ],
            out_specs=pl.BlockSpec((tm, h_pad), lambda i, k: (i, 0)),
            scratch_shapes=[pltpu.VMEM((tm, h_pad), jnp.float32)],
        ),
        compiler_params=pltpu.CompilerParams(
            dimension_semantics=("parallel", "arbitrary"),
            vmem_limit_bytes=64 * 1024 * 1024,
        ),
    )(a_p, x_p, w_p, b_p)

    return out_p[:N, :H]


def build_normalized_adjacency(edge_index, num_nodes):
    """Dense D^{-1/2} (A + I) D^{-1/2} matching PyG GCNConv defaults:
    duplicate edges are summed (scatter-add), explicit self-loops are replaced
    by a single unit self-loop per node (add_remaining_self_loops, fill=1)."""
    src = edge_index[0]
    dst = edge_index[1]
    not_loop = (src != dst).astype(jnp.float32)
    A = jnp.zeros((num_nodes, num_nodes), jnp.float32)
    A = A.at[dst, src].add(not_loop)                      # A[dst, src] += 1
    A = A + jnp.eye(num_nodes, dtype=jnp.float32)         # one self-loop / node
    deg = A.sum(axis=1)
    d_inv_sqrt = jnp.where(deg > 0, jax.lax.rsqrt(deg), 0.0)
    return d_inv_sqrt[:, None] * A * d_inv_sqrt[None, :]


def glorot_uniform(key, shape):
    fan_in, fan_out = shape
    limit = jnp.sqrt(6.0 / (fan_in + fan_out))
    return jax.random.uniform(key, shape, jnp.float32, -limit, limit)


class EncoderPallas:
    """JAX/Pallas port of Encoder(in_channels, out_channels, base_model='gcn')."""

    def __init__(self, in_channels, out_channels, key):
        kw, _ = jax.random.split(key)
        self.weight = glorot_uniform(kw, (in_channels, out_channels))
        self.bias = jnp.zeros((1, out_channels), jnp.float32)

    def __call__(self, x, edge_index):
        n = x.shape[0]
        a_norm = build_normalized_adjacency(edge_index, n)
        # NOTE: for problems this small, fused XLA would be as fast; the
        # Pallas path is kept unconditional here so the kernel is exercised.
        return gcn_conv_pallas(a_norm, x.astype(jnp.float32), self.weight, self.bias)


if __name__ == "__main__":
    key = jax.random.PRNGKey(0)
    k_x, k_e, k_p = jax.random.split(key, 3)

    N = 300           # nodes  (pads to 512 -> 2x2 grid: exercises tiling + accum)
    F = 16            # in_channels
    H = 32            # out_channels
    E = 1200          # directed edges

    x = jax.random.normal(k_x, (N, F), jnp.float32)
    edge_index = jax.random.randint(k_e, (2, E), 0, N, dtype=jnp.int32)

    enc = EncoderPallas(F, H, k_p)
    out = jax.block_until_ready(enc(x, edge_index))

    # sanity check against plain-JAX f32 reference (bf16 kernel inputs -> loose tol)
    a_norm = build_normalized_adjacency(edge_index, N)
    ref = a_norm @ (x @ enc.weight) + enc.bias
    assert out.shape == (N, H)
    err = float(jnp.max(jnp.abs(out - ref)))
    assert jnp.allclose(out, ref, atol=3e-2, rtol=3e-2), f"max abs err {err}"

    print("KERNEL_OK")
</pallas_src>

<mosaic_0001>
module attributes {stable_mosaic.version = 11 : i64} {
  func.func @gcn_conv_kernel(%arg0: i32, %arg1: i32, %arg2: memref<256x256xbf16, #tpu.memory_space<vmem>>, %arg3: memref<256x128xbf16, #tpu.memory_space<vmem>>, %arg4: memref<128x128xbf16, #tpu.memory_space<vmem>>, %arg5: memref<1x128xf32, #tpu.memory_space<vmem>>, %arg6: memref<256x128xf32, #tpu.memory_space<vmem>>, %arg7: memref<256x128xf32, #tpu.memory_space<vmem>>) attributes {dimension_semantics = [#tpu.dimension_semantics<parallel>, #tpu.dimension_semantics<arbitrary>], iteration_bounds = array<i64: 2, 2>, scalar_prefetch = 0 : i64, scratch_operands = 1 : i64, tpu.core_type = #tpu.core_type<tc>, window_params = [{transform_indices = @transform_0, window_bounds = array<i64: 256, 256>}, {transform_indices = @transform_1, window_bounds = array<i64: 256, 128>}, {pipeline_mode = #tpu.pipeline_mode<synchronous>, transform_indices = @transform_2, window_bounds = array<i64: 128, 128>}, {pipeline_mode = #tpu.pipeline_mode<synchronous>, transform_indices = @transform_3, window_bounds = array<i64: 1, 128>}, {transform_indices = @transform_4, window_bounds = array<i64: 256, 128>}]} {
    %c0_i32 = arith.constant 0 : i32
    %0 = arith.cmpi eq, %arg1, %c0_i32 : i32
    %1 = arith.extui %0 : i1 to i32
    %c0_i32_0 = arith.constant 0 : i32
    %2 = arith.cmpi ne, %1, %c0_i32_0 : i32
    scf.if %2 {
      %cst_12 = arith.constant 0.000000e+00 : f32
      %15 = vector.broadcast %cst_12 : f32 to vector<256x128xf32>
      %c0_13 = arith.constant 0 : index
      %c0_14 = arith.constant 0 : index
      %16 = vector.load %arg7[%c0_13, %c0_14] : memref<256x128xf32, #tpu.memory_space<vmem>>, vector<256x128xf32>
      tpu.vector_store %arg7[%c0_13, %c0_14], %15 {strides = array<i32>} : memref<256x128xf32, #tpu.memory_space<vmem>>, vector<256x128xf32>,
    } else {
    }
    %c0 = arith.constant 0 : index
    %c0_1 = arith.constant 0 : index
    %3 = vector.load %arg3[%c0, %c0_1] : memref<256x128xbf16, #tpu.memory_space<vmem>>, vector<256x128xbf16>
    %c0_2 = arith.constant 0 : index
    %c0_3 = arith.constant 0 : index
    %4 = vector.load %arg4[%c0_2, %c0_3] : memref<128x128xbf16, #tpu.memory_space<vmem>>, vector<128x128xbf16>
    %cst = arith.constant dense<0.000000e+00> : vector<256x128xf32>
    %5 = tpu.matmul %3, %4, %cst {dimension_numbers = #tpu.dot_dimension_numbers<[1], [0], [0], [1], [0, 0, 1, 1], [], []>} : vector<256x128xbf16>, vector<128x128xbf16>, vector<256x128xf32> -> vector<256x128xf32>
    %c0_4 = arith.constant 0 : index
    %c0_5 = arith.constant 0 : index
    %6 = vector.load %arg7[%c0_4, %c0_5] : memref<256x128xf32, #tpu.memory_space<vmem>>, vector<256x128xf32>
    %c0_6 = arith.constant 0 : index
    %c0_7 = arith.constant 0 : index
    %7 = vector.load %arg2[%c0_6, %c0_7] : memref<256x256xbf16, #tpu.memory_space<vmem>>, vector<256x256xbf16>
    %8 = arith.truncf %5 : vector<256x128xf32> to vector<256x128xbf16>
    %cst_8 = arith.constant dense<0.000000e+00> : vector<256x128xf32>
    %9 = tpu.matmul %7, %8, %cst_8 {dimension_numbers = #tpu.dot_dimension_numbers<[1], [0], [0], [1], [0, 0, 1, 1], [], []>} : vector<256x256xbf16>, vector<256x128xbf16>, vector<256x128xf32> -> vector<256x128xf32>
    %10 = arith.addf %6, %9 : vector<256x128xf32>
    %c0_9 = arith.constant 0 : index
    %c0_10 = arith.constant 0 : index
    %11 = vector.load %arg7[%c0_9, %c0_10] : memref<256x128xf32, #tpu.memory_space<vmem>>, vector<256x128xf32>
    tpu.vector_store %arg7[%c0_9, %c0_10], %10 {strides = array<i32>} : memref<256x128xf32, #tpu.memory_space<vmem>>, vector<256x128xf32>,
    %c1_i32 = arith.constant 1 : i32
    %12 = arith.cmpi eq, %arg1, %c1_i32 : i32
    %13 = arith.extui %12 : i1 to i32
    %c0_i32_11 = arith.constant 0 : i32
    %14 = arith.cmpi ne, %13, %c0_i32_11 : i32
    scf.if %14 {
      %c0_12 = arith.constant 0 : index
      %c0_13 = arith.constant 0 : index
      %15 = vector.load %arg7[%c0_12, %c0_13] : memref<256x128xf32, #tpu.memory_space<vmem>>, vector<256x128xf32>
      %c0_14 = arith.constant 0 : index
      %c0_15 = arith.constant 0 : index
      %16 = vector.load %arg5[%c0_14, %c0_15] : memref<1x128xf32, #tpu.memory_space<vmem>>, vector<1x128xf32>
      %17 = vector.broadcast %16 : vector<1x128xf32> to vector<256x128xf32>
      %18 = arith.addf %15, %17 : vector<256x128xf32>
      %c0_16 = arith.constant 0 : index
      %c0_17 = arith.constant 0 : index
      %19 = vector.load %arg6[%c0_16, %c0_17] : memref<256x128xf32, #tpu.memory_space<vmem>>, vector<256x128xf32>
      tpu.vector_store %arg6[%c0_16, %c0_17], %18 {strides = array<i32>} : memref<256x128xf32, #tpu.memory_space<vmem>>, vector<256x128xf32>,
    } else {
    }
    return
  }
  func.func @transform_0(%arg0: i32, %arg1: i32) -> (i32, i32) {
    %c0_i32 = arith.constant 0 : i32
    return %arg0, %arg1 : i32, i32
  }
  func.func @transform_1(%arg0: i32, %arg1: i32) -> (i32, i32) {
    %c0_i32 = arith.constant 0 : i32
    %c0_i32_0 = arith.constant 0 : i32
    return %arg1, %c0_i32 : i32, i32
  }
  func.func @transform_2(%arg0: i32, %arg1: i32) -> (i32, i32) {
    %c0_i32 = arith.constant 0 : i32
    %c0_i32_0 = arith.constant 0 : i32
    %c0_i32_1 = arith.constant 0 : i32
    return %c0_i32, %c0_i32_0 : i32, i32
  }
  func.func @transform_3(%arg0: i32, %arg1: i32) -> (i32, i32) {
    %c0_i32 = arith.constant 0 : i32
    %c0_i32_0 = arith.constant 0 : i32
    %c0_i32_1 = arith.constant 0 : i32
    return %c0_i32, %c0_i32_0 : i32, i32
  }
  func.func @transform_4(%arg0: i32, %arg1: i32) -> (i32, i32) {
    %c0_i32 = arith.constant 0 : i32
    %c0_i32_0 = arith.constant 0 : i32
    return %arg0, %c0_i32 : i32, i32
  }
}

</mosaic_0001>

<llo_original>
// kernel: tpu_custom_call.1
$region0: #{tpu_custom_call.1}
  #allocation0 [shape = 'u32[]', space=smem, size = 0x4, offset = 0x4, fixed_abs, tag = 'smem constant byte address 0x4 - core index']
  #allocation1 [shape = 'u32[144,128]{1,0:T(1,128)}', space=vmem, size = 0x12000, scoped, tag = 'internal scratch']
  #allocation2 [shape = 'f32[256,128]{1,0:T(8,128)}', space=vmem, size = 0x20000, scoped, tag = 'scratch operand']
  %s0 = inlined_call_operand.hbm [shape: bf16[512,512], index: 0, kind: input, shape index: {}]
  %s1 = inlined_call_operand.hbm [shape: bf16[512,128], index: 1, kind: input, shape index: {}]
  %s2 = inlined_call_operand.hbm [shape: bf16[128,128], index: 2, kind: input, shape index: {}]
  %s3 = inlined_call_operand.vmem [shape: f32[1,128], index: 3, kind: input, shape index: {}]
  %s4 = inlined_call_operand.hbm [shape: f32[512,128], index: 4, kind: output, shape index: {}]
  %s5 = sld [smem:[#allocation0]]
  $region69: #{tpu_custom_call.1} parent=0
    _
  %s7 = ssub.s32 1, %s5
  %s8 = scalar_select 0, %s7, %s5
  $region1: #{tpu_custom_call.1} parent=0
    #allocation3 [shape = 'u8[262144]{0}', space=vmem, size = 0x40000, scoped, tag = 'input window, operand 0']
    #allocation4 [shape = 's32[2]{0}', space=sflag, size = 0x8, scoped, tag = 'scoped memory for tpu_custom_call.1']
    #allocation5 [shape = 's32[2]{0}', space=sflag, size = 0x8, scoped, tag = 'scoped memory for tpu_custom_call.1']
    #allocation6 [shape = 'u8[131072]{0}', space=vmem, size = 0x20000, scoped, tag = 'input window, operand 1']
    #allocation7 [shape = 's32[2]{0}', space=sflag, size = 0x8, scoped, tag = 'scoped memory for tpu_custom_call.1']
    #allocation8 [shape = 'u8[32768]{0}', space=vmem, size = 0x8000, scoped, tag = 'input window, operand 2, single buffered']
    #allocation9 [shape = 'u8[262144]{0}', space=vmem, size = 0x40000, scoped, tag = 'output window, operand 0']
    %9 = vsyncpa [#allocation4], 0
    %s10 = scalar_lea.sflag [#allocation4], 1
    %11 = vsyncpa %s10, 0
    %12 = vsyncpa [#allocation7], 0
    %s13 = scalar_lea.sflag [#allocation7], 1
    %14 = vsyncpa %s13, 0
    %15 = vsyncpa [#allocation5], 0
    %s16 = scalar_lea.sflag [#allocation5], 1
    %17 = vsyncpa %s16, 0
    loop: start=0, step=1, limit=6
    $region2: #{tpu_custom_call.1} parent=1 // loop_pre_header
      _
    $region3: #{tpu_custom_call.1} parent=1 // loop_header
      %s19 = sphi 0, %s23
      %p20 = scmp.ge.s32.totalorder %s19, 6
      %s26 = sphi 0, %s38
      %s27 = sphi 0, %s34
      %s28 = sphi 0, %s26
      %s29 = sphi 0, %s27
      %s30 = sphi 0, %s28
      %s31 = sphi 0, %s29
      %s43 = sphi 0, %s45
      %s46 = sphi 0, %s43
      %s47 = sphi 0, %s46
      %s63 = sphi 0, %s47
      %s69 = sphi 0, %s71
      %s72 = sphi 0, %s69
      %s73 = sphi 0, %s72
      %s89 = sphi 0, %s73
      %s93 = sphi 0, %s93
      %s95 = sphi 0, %s93
      %s96 = sphi 0, %s95
      %s110 = sphi 0, %s96
      %s114 = sphi 0, %s114
      %s116 = sphi 0, %s114
      %s117 = sphi 0, %s116
      %s131 = sphi 0, %s117
      %s137 = sphi 0, %s139
      %s140 = sphi 0, %s137
      %s141 = sphi 0, %s140
      %s157 = sphi 0, %s141
    $region4: #{tpu_custom_call.1} parent=1 // loop_header_branch
      %22 = sbr.rel (%p20) target = $region8
    $region5: #{tpu_custom_call.1} parent=1 // loop_body
      %s24 = ssub.s32 %s19, 1
      %s25 = ssub.s32 %s19, 2
      %s32 = sadd.s32 1, %s27
      %p33 = scmp.ge.s32.totalorder %s32, 2
      %s34 = scalar_select %p33, 0, %s32
      %s35 = sadd.s32 1, %s26
      %s36 = scalar_select %p33, %s35, %s26
      %p37 = scmp.ge.s32.totalorder %s36, 2
      %s38 = scalar_select %p37, 0, %s36
      %s39 = ssub.s32 %s26, %s38
      %s40 = ssub.s32 %s27, %s34
      %s41 = sor.u32 %s39, %s40
      %p42 = scmp.eq.s32.totalorder %s41, 0
      %s44 = sadd.s32 %s43, 1
      %s45 = scalar_select %p42, %s43, %s44
      %p48 = pneg %p42
      %p49 = scmp.eq.s32.totalorder %s19, 3
      %p50 = por %p48, %p49
      %p51 = scmp.ne.s32.totalorder %s43, %s46
      %p52 = scmp.eq.s32.totalorder %s19, 0
      %p53 = por %p51, %p52
      %p54 = scmp.ne.s32.totalorder %s43, %s46
      %p55 = scmp.eq.s32.totalorder %s24, 3
      %p56 = por %p54, %p55
      %p57 = scmp.ne.s32.totalorder %s46, %s47
      %p58 = scmp.eq.s32.totalorder %s24, 0
      %p59 = por %p57, %p58
      %p60 = scmp.ne.s32.totalorder %s46, %s47
      %p61 = scmp.eq.s32.totalorder %s25, 3
      %p62 = por %p60, %p61
      %p64 = scmp.ne.s32.totalorder %s47, %s63
      %p65 = scmp.eq.s32.totalorder %s25, 0
      %p66 = por %p64, %p65
      %s67 = ssub.s32 %s27, %s34
      %p68 = scmp.eq.s32.totalorder %s67, 0
      %s70 = sadd.s32 %s69, 1
      %s71 = scalar_select %p68, %s69, %s70
      %p74 = pneg %p68
      %p75 = scmp.eq.s32.totalorder %s19, 3
      %p76 = por %p74, %p75
      %p77 = scmp.ne.s32.totalorder %s69, %s72
      %p78 = scmp.eq.s32.totalorder %s19, 0
      %p79 = por %p77, %p78
      %p80 = scmp.ne.s32.totalorder %s69, %s72
      %p81 = scmp.eq.s32.totalorder %s24, 3
      %p82 = por %p80, %p81
      %p83 = scmp.ne.s32.totalorder %s72, %s73
      %p84 = scmp.eq.s32.totalorder %s24, 0
      %p85 = por %p83, %p84
      %p86 = scmp.ne.s32.totalorder %s72, %s73
      %p87 = scmp.eq.s32.totalorder %s25, 3
      %p88 = por %p86, %p87
      %p90 = scmp.ne.s32.totalorder %s73, %s89
      %p91 = scmp.eq.s32.totalorder %s25, 0
      %p92 = por %p90, %p91
      %s94 = sadd.s32 %s93, 1
      %p97 = scmp.eq.s32.totalorder %s19, 3
      %p98 = scmp.ne.s32.totalorder %s93, %s95
      %p99 = scmp.eq.s32.totalorder %s19, 0
      %p100 = por %p98, %p99
      %p101 = scmp.ne.s32.totalorder %s93, %s95
      %p102 = scmp.eq.s32.totalorder %s24, 3
      %p103 = por %p101, %p102
      %p104 = scmp.ne.s32.totalorder %s95, %s96
      %p105 = scmp.eq.s32.totalorder %s24, 0
      %p106 = por %p104, %p105
      %p107 = scmp.ne.s32.totalorder %s95, %s96
      %p108 = scmp.eq.s32.totalorder %s25, 3
      %p109 = por %p107, %p108
      %p111 = scmp.ne.s32.totalorder %s96, %s110
      %p112 = scmp.eq.s32.totalorder %s25, 0
      %p113 = por %p111, %p112
      %s115 = sadd.s32 %s114, 1
      %p118 = scmp.eq.s32.totalorder %s19, 3
      %p119 = scmp.ne.s32.totalorder %s114, %s116
      %p120 = scmp.eq.s32.totalorder %s19, 0
      %p121 = por %p119, %p120
      %p122 = scmp.ne.s32.totalorder %s114, %s116
      %p123 = scmp.eq.s32.totalorder %s24, 3
      %p124 = por %p122, %p123
      %p125 = scmp.ne.s32.totalorder %s116, %s117
      %p126 = scmp.eq.s32.totalorder %s24, 0
      %p127 = por %p125, %p126
      %p128 = scmp.ne.s32.totalorder %s116, %s117
      %p129 = scmp.eq.s32.totalorder %s25, 3
      %p130 = por %p128, %p129
      %p132 = scmp.ne.s32.totalorder %s117, %s131
      %p133 = scmp.eq.s32.totalorder %s25, 0
      %p134 = por %p132, %p133
      %s135 = ssub.s32 %s26, %s38
      %p136 = scmp.eq.s32.totalorder %s135, 0
      %s138 = sadd.s32 %s137, 1
      %s139 = scalar_select %p136, %s137, %s138
      %p142 = pneg %p136
      %p143 = scmp.eq.s32.totalorder %s19, 3
      %p144 = por %p142, %p143
      %p145 = scmp.ne.s32.totalorder %s137, %s140
      %p146 = scmp.eq.s32.totalorder %s19, 0
      %p147 = por %p145, %p146
      %p148 = scmp.ne.s32.totalorder %s137, %s140
      %p149 = scmp.eq.s32.totalorder %s24, 3
      %p150 = por %p148, %p149
      %p151 = scmp.ne.s32.totalorder %s140, %s141
      %p152 = scmp.eq.s32.totalorder %s24, 0
      %p153 = por %p151, %p152
      %p154 = scmp.ne.s32.totalorder %s140, %s141
      %p155 = scmp.eq.s32.totalorder %s25, 3
      %p156 = por %p154, %p155
      %p158 = scmp.ne.s32.totalorder %s141, %s157
      %p159 = scmp.eq.s32.totalorder %s25, 0
      %p160 = por %p158, %p159
      %p161 = scmp.le.s32.totalorder 1, %s19
      %p162 = scmp.lt.s32.totalorder %s19, 5
      %p163 = pnand %p161, %p162
      %p164 = pneg %p163
      // Predicated region
      $region9: #{tpu_custom_call.1} parent=5 // pred_check
        _
      $region10: #{tpu_custom_call.1} parent=5 // pred_check_branch
        %166 = sbr.rel (%p163) target = $region12
      $region11: #{tpu_custom_call.1} parent=5 // pred_region
        %s167 = ssub.s32 %s19, 1
        // Predicated region
        $region13: #{tpu_custom_call.1} parent=11 // pred_check
          %p168 = pneg %p106
        $region14: #{tpu_custom_call.1} parent=11 // pred_check_branch
          %170 = sbr.rel (%p168) target = $region16
        $region15: #{tpu_custom_call.1} parent=11 // pred_region
          %s172 = ssub.s32 1024, 1024
          %173 = vsyncadd [#allocation7], %s172
          %s174 = sshll.u32 [#allocation8], 4
          %s175 = int_to_ptr.vmem [resolvable:$true] %s174
          %180 = dma.hbm_to_vmem [thread:$0]  %s2, 1024, %s175, [#allocation7], 64, 64, 4
        $region16: #{tpu_custom_call.1} parent=11 // pred_fallthru
          _
        // Predicated region
        $region17: #{tpu_custom_call.1} parent=11 // pred_check
          %p181 = pneg %p127
        $region18: #{tpu_custom_call.1} parent=11 // pred_check_branch
          %183 = sbr.rel (%p181) target = $region20
        $region19: #{tpu_custom_call.1} parent=11 // pred_region
          _
        $region20: #{tpu_custom_call.1} parent=11 // pred_fallthru
          _
      $region12: #{tpu_custom_call.1} parent=5 // pred_fallthru
        _
      %p184 = scmp.lt.s32.totalorder %s19, 4
      // Predicated region
      $region21: #{tpu_custom_call.1} parent=5 // pred_check
        %p185 = pneg %p184
      $region22: #{tpu_custom_call.1} parent=5 // pred_check_branch
        %187 = sbr.rel (%p185) target = $region24
      $region23: #{tpu_custom_call.1} parent=5 // pred_region
        // Predicated region
        $region25: #{tpu_custom_call.1} parent=23 // pred_check
          %p188 = pneg %p53
        $region26: #{tpu_custom_call.1} parent=23 // pred_check_branch
          %190 = sbr.rel (%p188) target = $region28
        $region27: #{tpu_custom_call.1} parent=23 // pred_region
          %s191 = sand.u32 %s43, 1
          %s192 = scalar_lea.sflag [#allocation4], %s191
          %s193 = sand.u32 %s43, 1
          %s194 = smul.addr %s193, 256
          %s195 = scalar_lea.vmem [#allocation3], %s194
          %s196 = smul.u32 32, %s26
          %s197 = smul.u32 2, %s27
          %s199 = ssub.s32 4096, 4096
          %200 = vsyncadd %s192, %s199
          %s201 = smul.addr %s196, 4
          %s202 = sadd.s32 %s197, %s201
          %s203 = smul.addr %s202, 64
          %s204 = scalar_lea.hbm %s0, %s203
          %s205 = sshll.u32 %s195, 4
          %s206 = int_to_ptr.vmem [resolvable:$true] %s205
          %211 = dma.hbm_to_vmem [thread:$0]  %s204, 4096, %s206, %s192, 256, 128, 8
        $region28: #{tpu_custom_call.1} parent=23 // pred_fallthru
          _
        // Predicated region
        $region29: #{tpu_custom_call.1} parent=23 // pred_check
          %p212 = pneg %p79
        $region30: #{tpu_custom_call.1} parent=23 // pred_check_branch
          %214 = sbr.rel (%p212) target = $region32
        $region31: #{tpu_custom_call.1} parent=23 // pred_region
          %s215 = sand.u32 %s19, 1
          %s216 = scalar_lea.sflag [#allocation7], %s215
          %s217 = sand.u32 %s69, 1
          %s218 = smul.addr %s217, 128
          %s219 = scalar_lea.vmem [#allocation6], %s218
          %s220 = smul.u32 32, %s27
          %s222 = ssub.s32 2048, 2048
          %223 = vsyncadd %s216, %s222
          %s224 = smul.addr %s220, 64
          %s225 = scalar_lea.hbm %s1, %s224
          %s226 = sshll.u32 %s219, 4
          %s227 = int_to_ptr.vmem [resolvable:$true] %s226
          %232 = dma.hbm_to_vmem [thread:$0]  %s225, 2048, %s227, %s216, 64, 64, 4
        $region32: #{tpu_custom_call.1} parent=23 // pred_fallthru
          _
      $region24: #{tpu_custom_call.1} parent=5 // pred_fallthru
        _
      %p233 = scmp.le.s32.totalorder 1, %s19
      %p234 = scmp.lt.s32.totalorder %s19, 5
      %p235 = pnand %p233, %p234
      %p236 = pneg %p235
      // Predicated region
      $region33: #{tpu_custom_call.1} parent=5 // pred_check
        _
      $region34: #{tpu_custom_call.1} parent=5 // pred_check_branch
        %238 = sbr.rel (%p235) target = $region36
      $region35: #{tpu_custom_call.1} parent=5 // pred_region
        %s239 = ssub.s32 %s19, 1
        %s240 = sand.u32 %s46, 1
        %s241 = scalar_lea.sflag [#allocation4], %s240
        %s242 = sand.u32 %s46, 1
        %s243 = smul.addr %s242, 256
        %s244 = scalar_lea.vmem [#allocation3], %s243
        // Predicated region
        $region37: #{tpu_custom_call.1} parent=35 // pred_check
          %p245 = pneg %p59
        $region38: #{tpu_custom_call.1} parent=35 // pred_check_branch
          %247 = sbr.rel (%p245) target = $region40
        $region39: #{tpu_custom_call.1} parent=35 // pred_region
          %248 = dma.done %s241, 4096
        $region40: #{tpu_custom_call.1} parent=35 // pred_fallthru
          _
        %s249 = sand.u32 %s24, 1
        %s250 = scalar_lea.sflag [#allocation7], %s249
        %s251 = sand.u32 %s72, 1
        %s252 = smul.addr %s251, 128
        %s253 = scalar_lea.vmem [#allocation6], %s252
        // Predicated region
        $region41: #{tpu_custom_call.1} parent=35 // pred_check
          %p254 = pneg %p85
        $region42: #{tpu_custom_call.1} parent=35 // pred_check_branch
          %256 = sbr.rel (%p254) target = $region44
        $region43: #{tpu_custom_call.1} parent=35 // pred_region
          %257 = dma.done %s250, 2048
        $region44: #{tpu_custom_call.1} parent=35 // pred_fallthru
          _
        // Predicated region
        $region45: #{tpu_custom_call.1} parent=35 // pred_check
          %p258 = pneg %p106
        $region46: #{tpu_custom_call.1} parent=35 // pred_check_branch
          %260 = sbr.rel (%p258) target = $region48
        $region47: #{tpu_custom_call.1} parent=35 // pred_region
          %261 = dma.done [#allocation7], 1024
        $region48: #{tpu_custom_call.1} parent=35 // pred_fallthru
          _
        %s262 = sand.u32 %s46, 1
        %s263 = scalar_lea.sflag [#allocation4], %s262
        %s264 = sand.u32 %s46, 1
        %s265 = smul.addr %s264, 256
        %s266 = scalar_lea.vmem [#allocation3], %s265
        %p267 = pneg %p59
        %p268 = pneg %p56
        %s269 = sand.u32 %s24, 1
        %s270 = scalar_lea.sflag [#allocation7], %s269
        %s271 = sand.u32 %s72, 1
        %s272 = smul.addr %s271, 128
        %s273 = scalar_lea.vmem [#allocation6], %s272
        %p274 = pneg %p85
        %p275 = pneg %p82
        %p276 = pneg %p106
        %p277 = pneg %p103
        %p278 = pneg %p127
        %p279 = pneg %p124
        %p280 = pneg %p153
        %p281 = pneg %p150
        %s282 = sand.u32 %s140, 1
        %s283 = scalar_lea.sflag [#allocation5], %s282
        %s284 = sand.u32 %s140, 1
        %s285 = smul.addr %s284, 256
        %s286 = scalar_lea.vmem [#allocation9], %s285
        %s287 = smul.u32 32, %s28
        %s288 = smul.u32 2, %s29
        %s289 = smul.u32 32, %s29
        %s290 = smul.u32 32, %s28
        %p292 = scmp.eq.s32.totalorder %s29, 0
        // Predicated region
        $region49: #{tpu_custom_call.1} parent=35 // pred_check
          %p293 = pneg %p292
        $region50: #{tpu_custom_call.1} parent=35 // pred_check_branch
          %295 = sbr.rel (%p293) target = $region52
        $region51: #{tpu_custom_call.1} parent=35 // pred_region
          %296 = vst [vmem:[#allocation2] sm:$0xff] 0.0
          %297 = vst [vmem:[#allocation2 + $0x8] sm:$0xff] 0.0
          %298 = vst [vmem:[#allocation2 + $0x10] sm:$0xff] 0.0
          %299 = vst [vmem:[#allocation2 + $0x18] sm:$0xff] 0.0
          %300 = vst [vmem:[#allocation2 + $0x20] sm:$0xff] 0.0
          %301 = vst [vmem:[#allocation2 + $0x28] sm:$0xff] 0.0
          %302 = vst [vmem:[#allocation2 + $0x30] sm:$0xff] 0.0
          %303 = vst [vmem:[#allocation2 + $0x38] sm:$0xff] 0.0
          %304 = vst [vmem:[#allocation2 + $0x40] sm:$0xff] 0.0
          %305 = vst [vmem:[#allocation2 + $0x48] sm:$0xff] 0.0
          %306 = vst [vmem:[#allocation2 + $0x50] sm:$0xff] 0.0
          %307 = vst [vmem:[#allocation2 + $0x58] sm:$0xff] 0.0
          %308 = vst [vmem:[#allocation2 + $0x60] sm:$0xff] 0.0
          %309 = vst [vmem:[#allocation2 + $0x68] sm:$0xff] 0.0
          %310 = vst [vmem:[#allocation2 + $0x70] sm:$0xff] 0.0
          %311 = vst [vmem:[#allocation2 + $0x78] sm:$0xff] 0.0
          %312 = vst [vmem:[#allocation2 + $0x80] sm:$0xff] 0.0
          %313 = vst [vmem:[#allocation2 + $0x88] sm:$0xff] 0.0
          %314 = vst [vmem:[#allocation2 + $0x90] sm:$0xff] 0.0
          %315 = vst [vmem:[#allocation2 + $0x98] sm:$0xff] 0.0
          %316 = vst [vmem:[#allocation2 + $0xa0] sm:$0xff] 0.0
          %317 = vst [vmem:[#allocation2 + $0xa8] sm:$0xff] 0.0
          %318 = vst [vmem:[#allocation2 + $0xb0] sm:$0xff] 0.0
          %319 = vst [vmem:[#allocation2 + $0xb8] sm:$0xff] 0.0
          %320 = vst [vmem:[#allocation2 + $0xc0] sm:$0xff] 0.0
          %321 = vst [vmem:[#allocation2 + $0xc8] sm:$0xff] 0.0
          %322 = vst [vmem:[#allocation2 + $0xd0] sm:$0xff] 0.0
          %323 = vst [vmem:[#allocation2 + $0xd8] sm:$0xff] 0.0
          %324 = vst [vmem:[#allocation2 + $0xe0] sm:$0xff] 0.0
          %325 = vst [vmem:[#allocation2 + $0xe8] sm:$0xff] 0.0
          %326 = vst [vmem:[#allocation2 + $0xf0] sm:$0xff] 0.0
          %327 = vst [vmem:[#allocation2 + $0xf8] sm:$0xff] 0.0
        $region52: #{tpu_custom_call.1} parent=35 // pred_fallthru
          _
        %v328 = vld [vmem:[%s253] sm:$0xf]
        %v329 = vld [vmem:[%s253 + $0x4] sm:$0xf]
        %v330 = vld [vmem:[%s253 + $0x8] sm:$0xf]
        %v331 = vld [vmem:[%s253 + $0xc] sm:$0xf]
        %v332 = vld [vmem:[%s253 + $0x10] sm:$0xf]
        %v333 = vld [vmem:[%s253 + $0x14] sm:$0xf]
        %v334 = vld [vmem:[%s253 + $0x18] sm:$0xf]
        %v335 = vld [vmem:[%s253 + $0x1c] sm:$0xf]
        %v336 = vld [vmem:[%s253 + $0x20] sm:$0xf]
        %v337 = vld [vmem:[%s253 + $0x24] sm:$0xf]
        %v338 = vld [vmem:[%s253 + $0x28] sm:$0xf]
        %v339 = vld [vmem:[%s253 + $0x2c] sm:$0xf]
        %v340 = vld [vmem:[%s253 + $0x30] sm:$0xf]
        %v341 = vld [vmem:[%s253 + $0x34] sm:$0xf]
        %v342 = vld [vmem:[%s253 + $0x38] sm:$0xf]
        %v343 = vld [vmem:[%s253 + $0x3c] sm:$0xf]
        %v344 = vld [vmem:[%s253 + $0x40] sm:$0xf]
        %v345 = vld [vmem:[%s253 + $0x44] sm:$0xf]
        %v346 = vld [vmem:[%s253 + $0x48] sm:$0xf]
        %v347 = vld [vmem:[%s253 + $0x4c] sm:$0xf]
        %v348 = vld [vmem:[%s253 + $0x50] sm:$0xf]
        %v349 = vld [vmem:[%s253 + $0x54] sm:$0xf]
        %v350 = vld [vmem:[%s253 + $0x58] sm:$0xf]
        %v351 = vld [vmem:[%s253 + $0x5c] sm:$0xf]
        %v352 = vld [vmem:[%s253 + $0x60] sm:$0xf]
        %v353 = vld [vmem:[%s253 + $0x64] sm:$0xf]
        %v354 = vld [vmem:[%s253 + $0x68] sm:$0xf]
        %v355 = vld [vmem:[%s253 + $0x6c] sm:$0xf]
        %v356 = vld [vmem:[%s253 + $0x70] sm:$0xf]
        %v357 = vld [vmem:[%s253 + $0x74] sm:$0xf]
        %v358 = vld [vmem:[%s253 + $0x78] sm:$0xf]
        %v359 = vld [vmem:[%s253 + $0x7c] sm:$0xf]
        %v360 = vld [vmem:[#allocation8] sm:$0xf]
        %v361 = vld [vmem:[#allocation8 + $0x4] sm:$0xf]
        %v362 = vld [vmem:[#allocation8 + $0x8] sm:$0xf]
        %v363 = vld [vmem:[#allocation8 + $0xc] sm:$0xf]
        %v364 = vld [vmem:[#allocation8 + $0x10] sm:$0xf]
        %v365 = vld [vmem:[#allocation8 + $0x14] sm:$0xf]
        %v366 = vld [vmem:[#allocation8 + $0x18] sm:$0xf]
        %v367 = vld [vmem:[#allocation8 + $0x1c] sm:$0xf]
        %v368 = vld [vmem:[#allocation8 + $0x20] sm:$0xf]
        %v369 = vld [vmem:[#allocation8 + $0x24] sm:$0xf]
        %v370 = vld [vmem:[#allocation8 + $0x28] sm:$0xf]
        %v371 = vld [vmem:[#allocation8 + $0x2c] sm:$0xf]
        %v372 = vld [vmem:[#allocation8 + $0x30] sm:$0xf]
        %v373 = vld [vmem:[#allocation8 + $0x34] sm:$0xf]
        %v374 = vld [vmem:[#allocation8 + $0x38] sm:$0xf]
        %v375 = vld [vmem:[#allocation8 + $0x3c] sm:$0xf]
        %v408 = vunpack.c.l.b16 %v328
        %v409 = vunpack.c.l.b16 %v329
        %v410 = vunpack.c.l.b16 %v330
        %v411 = vunpack.c.l.b16 %v331
        %v412 = vunpack.c.l.b16 %v332
        %v413 = vunpack.c.l.b16 %v333
        %v414 = vunpack.c.l.b16 %v334
        %v415 = vunpack.c.l.b16 %v335
        %v416 = vunpack.c.l.b16 %v336
        %v417 = vunpack.c.l.b16 %v337
        %v418 = vunpack.c.l.b16 %v338
        %v419 = vunpack.c.l.b16 %v339
        %v420 = vunpack.c.l.b16 %v340
        %v421 = vunpack.c.l.b16 %v341
        %v422 = vunpack.c.l.b16 %v342
        %v423 = vunpack.c.l.b16 %v343
        %v424 = vunpack.c.l.b16 %v344
        %v425 = vunpack.c.l.b16 %v345
        %v426 = vunpack.c.l.b16 %v346
        %v427 = vunpack.c.l.b16 %v347
        %v428 = vunpack.c.l.b16 %v348
        %v429 = vunpack.c.l.b16 %v349
        %v430 = vunpack.c.l.b16 %v350
        %v431 = vunpack.c.l.b16 %v351
        %v432 = vunpack.c.l.b16 %v352
        %v433 = vunpack.c.l.b16 %v353
        %v434 = vunpack.c.l.b16 %v354
        %v435 = vunpack.c.l.b16 %v355
        %v436 = vunpack.c.l.b16 %v356
        %v437 = vunpack.c.l.b16 %v357
        %v438 = vunpack.c.l.b16 %v358
        %v439 = vunpack.c.l.b16 %v359
        %v440 = vpack.c.b16 %v409, %v408
        %v441 = vpack.c.b16 %v411, %v410
        %v442 = vpack.c.b16 %v413, %v412
        %v443 = vpack.c.b16 %v415, %v414
        %v444 = vpack.c.b16 %v417, %v416
        %v445 = vpack.c.b16 %v419, %v418
        %v446 = vpack.c.b16 %v421, %v420
        %v447 = vpack.c.b16 %v423, %v422
        %v448 = vpack.c.b16 %v425, %v424
        %v449 = vpack.c.b16 %v427, %v426
        %v450 = vpack.c.b16 %v429, %v428
        %v451 = vpack.c.b16 %v431, %v430
        %v452 = vpack.c.b16 %v433, %v432
        %v453 = vpack.c.b16 %v435, %v434
        %v454 = vpack.c.b16 %v437, %v436
        %v455 = vpack.c.b16 %v439, %v438
        %v488 = vunpack.c.l.b16 %v360
        %v489 = vunpack.c.l.b16 %v361
        %v490 = vunpack.c.l.b16 %v362
        %v491 = vunpack.c.l.b16 %v363
        %v492 = vunpack.c.l.b16 %v364
        %v493 = vunpack.c.l.b16 %v365
        %v494 = vunpack.c.l.b16 %v366
        %v495 = vunpack.c.l.b16 %v367
        %v496 = vunpack.c.l.b16 %v368
        %v497 = vunpack.c.l.b16 %v369
        %v498 = vunpack.c.l.b16 %v370
        %v499 = vunpack.c.l.b16 %v371
        %v500 = vunpack.c.l.b16 %v372
        %v501 = vunpack.c.l.b16 %v373
        %v502 = vunpack.c.l.b16 %v374
        %v503 = vunpack.c.l.b16 %v375
        %v504 = vpack.c.b16 %v489, %v488
        %v505 = vpack.c.b16 %v491, %v490
        %v506 = vpack.c.b16 %v493, %v492
        %v507 = vpack.c.b16 %v495, %v494
        %v508 = vpack.c.b16 %v497, %v496
        %v509 = vpack.c.b16 %v499, %v498
        %v510 = vpack.c.b16 %v501, %v500
        %v511 = vpack.c.b16 %v503, %v502
        %520 = vmatprep.subr.bf16.mxu0 0
        %521 = vmatpush1.bf16.msra.mxu0 %v511
        %522 = vmatprep.subr.bf16.mxu0 0
        %523 = vmatpush1.bf16.msra.mxu0 %v510
        %524 = vmatprep.subr.bf16.mxu0 0
        %525 = vmatpush1.bf16.msra.mxu0 %v509
        %526 = vmatprep.subr.bf16.mxu0 0
        %527 = vmatpush1.bf16.msra.mxu0 %v508
        %528 = vmatprep.subr.bf16.mxu0 0
        %529 = vmatpush1.bf16.msra.mxu0 %v507
        %530 = vmatprep.subr.bf16.mxu0 0
        %531 = vmatpush1.bf16.msra.mxu0 %v506
        %532 = vmatprep.subr.bf16.mxu0 0
        %533 = vmatpush1.bf16.msra.mxu0 %v505
        %534 = vmatprep.subr.bf16.mxu0 0
        %535 = vmatpush1.bf16.msra.mxu0 %v504
        %536 = vmatprep.subr.bf16.mxu0 0
        %537 = vmatpush2.bf16.msra.mxu0 0
        %538 = vmatprep.subr.bf16.mxu0 0
        %539 = vmatpush2.bf16.msra.mxu0 0
        %540 = vmatprep.subr.bf16.mxu0 0
        %541 = vmatpush2.bf16.msra.mxu0 0
        %542 = vmatprep.subr.bf16.mxu0 0
        %543 = vmatpush2.bf16.msra.mxu0 0
        %544 = vmatprep.subr.bf16.mxu0 0
        %545 = vmatpush2.bf16.msra.mxu0 0
        %546 = vmatprep.subr.bf16.mxu0 0
        %547 = vmatpush2.bf16.msra.mxu0 0
        %548 = vmatprep.subr.bf16.mxu0 0
        %549 = vmatpush2.bf16.msra.mxu0 0
        %550 = vmatprep.subr.bf16.mxu0 0
        %551 = vmatpush2.bf16.msra.mxu0 0
        %552 = vmatprep.mubr.bf16.mxu0 0
        %553 = vmatmul.mubr.bf16.gmra.mxu0 %v440
        %v554 = vpop.f32.mrf.mxu0
        %v555 = vadd.f32 0.0, %v554
        %v556 = vpop.f32.mrf.mxu0
        %v557 = vpop.f32.mrf.mxu0
        %v558 = vadd.f32 0.0, %v557
        %v559 = vpop.f32.mrf.mxu0
        %560 = vmatprep.mubr.bf16.mxu0 0
        %561 = vmatmul.mubr.bf16.gmra.mxu0 %v441
        %v562 = vpop.f32.mrf.mxu0
        %v563 = vadd.f32 0.0, %v562
        %v564 = vpop.f32.mrf.mxu0
        %v565 = vpop.f32.mrf.mxu0
        %v566 = vadd.f32 0.0, %v565
        %v567 = vpop.f32.mrf.mxu0
        %568 = vmatprep.mubr.bf16.mxu0 0
        %569 = vmatmul.mubr.bf16.gmra.mxu0 %v442
        %v570 = vpop.f32.mrf.mxu0
        %v571 = vadd.f32 0.0, %v570
        %v572 = vpop.f32.mrf.mxu0
        %v573 = vpop.f32.mrf.mxu0
        %v574 = vadd.f32 0.0, %v573
        %v575 = vpop.f32.mrf.mxu0
        %576 = vmatprep.mubr.bf16.mxu0 0
        %577 = vmatmul.mubr.bf16.gmra.mxu0 %v443
        %v578 = vpop.f32.mrf.mxu0
        %v579 = vadd.f32 0.0, %v578
        %v580 = vpop.f32.mrf.mxu0
        %v581 = vpop.f32.mrf.mxu0
        %v582 = vadd.f32 0.0, %v581
        %v583 = vpop.f32.mrf.mxu0
        %584 = vmatprep.mubr.bf16.mxu0 0
        %585 = vmatmul.mubr.bf16.gmra.mxu0 %v444
        %v586 = vpop.f32.mrf.mxu0
        %v587 = vadd.f32 0.0, %v586
        %v588 = vpop.f32.mrf.mxu0
        %v589 = vpop.f32.mrf.mxu0
        %v590 = vadd.f32 0.0, %v589
        %v591 = vpop.f32.mrf.mxu0
        %592 = vmatprep.mubr.bf16.mxu0 0
        %593 = vmatmul.mubr.bf16.gmra.mxu0 %v445
        %v594 = vpop.f32.mrf.mxu0
        %v595 = vadd.f32 0.0, %v594
        %v596 = vpop.f32.mrf.mxu0
        %v597 = vpop.f32.mrf.mxu0
        %v598 = vadd.f32 0.0, %v597
        %v599 = vpop.f32.mrf.mxu0
        %600 = vmatprep.mubr.bf16.mxu0 0
        %601 = vmatmul.mubr.bf16.gmra.mxu0 %v446
        %v602 = vpop.f32.mrf.mxu0
        %v603 = vadd.f32 0.0, %v602
        %v604 = vpop.f32.mrf.mxu0
        %v605 = vpop.f32.mrf.mxu0
        %v606 = vadd.f32 0.0, %v605
        %v607 = vpop.f32.mrf.mxu0
        %608 = vmatprep.mubr.bf16.mxu0 0
        %609 = vmatmul.mubr.bf16.gmra.mxu0 %v447
        %v610 = vpop.f32.mrf.mxu0
        %v611 = vadd.f32 0.0, %v610
        %v612 = vpop.f32.mrf.mxu0
        %v613 = vpop.f32.mrf.mxu0
        %v614 = vadd.f32 0.0, %v613
        %v615 = vpop.f32.mrf.mxu0
        %616 = vmatprep.mubr.bf16.mxu0 0
        %617 = vmatmul.mubr.bf16.gmra.mxu0 %v448
        %v618 = vpop.f32.mrf.mxu0
        %v619 = vadd.f32 0.0, %v618
        %v620 = vpop.f32.mrf.mxu0
        %v621 = vpop.f32.mrf.mxu0
        %v622 = vadd.f32 0.0, %v621
        %v623 = vpop.f32.mrf.mxu0
        %624 = vmatprep.mubr.bf16.mxu0 0
        %625 = vmatmul.mubr.bf16.gmra.mxu0 %v449
        %v626 = vpop.f32.mrf.mxu0
        %v627 = vadd.f32 0.0, %v626
        %v628 = vpop.f32.mrf.mxu0
        %v629 = vpop.f32.mrf.mxu0
        %v630 = vadd.f32 0.0, %v629
        %v631 = vpop.f32.mrf.mxu0
        %632 = vmatprep.mubr.bf16.mxu0 0
        %633 = vmatmul.mubr.bf16.gmra.mxu0 %v450
        %v634 = vpop.f32.mrf.mxu0
        %v635 = vadd.f32 0.0, %v634
        %v636 = vpop.f32.mrf.mxu0
        %v637 = vpop.f32.mrf.mxu0
        %v638 = vadd.f32 0.0, %v637
        %v639 = vpop.f32.mrf.mxu0
        %640 = vmatprep.mubr.bf16.mxu0 0
        %641 = vmatmul.mubr.bf16.gmra.mxu0 %v451
        %v642 = vpop.f32.mrf.mxu0
        %v643 = vadd.f32 0.0, %v642
        %v644 = vpop.f32.mrf.mxu0
        %v645 = vpop.f32.mrf.mxu0
        %v646 = vadd.f32 0.0, %v645
        %v647 = vpop.f32.mrf.mxu0
        %648 = vmatprep.mubr.bf16.mxu0 0
        %649 = vmatmul.mubr.bf16.gmra.mxu0 %v452
        %v650 = vpop.f32.mrf.mxu0
        %v651 = vadd.f32 0.0, %v650
        %v652 = vpop.f32.mrf.mxu0
        %v653 = vpop.f32.mrf.mxu0
        %v654 = vadd.f32 0.0, %v653
        %v655 = vpop.f32.mrf.mxu0
        %656 = vmatprep.mubr.bf16.mxu0 0
        %657 = vmatmul.mubr.bf16.gmra.mxu0 %v453
        %v658 = vpop.f32.mrf.mxu0
        %v659 = vadd.f32 0.0, %v658
        %v660 = vpop.f32.mrf.mxu0
        %v661 = vpop.f32.mrf.mxu0
        %v662 = vadd.f32 0.0, %v661
        %v663 = vpop.f32.mrf.mxu0
        %664 = vmatprep.mubr.bf16.mxu0 0
        %665 = vmatmul.mubr.bf16.gmra.mxu0 %v454
        %v666 = vpop.f32.mrf.mxu0
        %v667 = vadd.f32 0.0, %v666
        %v668 = vpop.f32.mrf.mxu0
        %v669 = vpop.f32.mrf.mxu0
        %v670 = vadd.f32 0.0, %v669
        %v671 = vpop.f32.mrf.mxu0
        %672 = vmatprep.mubr.bf16.mxu0 0
        %673 = vmatmul.mubr.bf16.gmra.mxu0 %v455
        %v674 = vpop.f32.mrf.mxu0
        %v675 = vadd.f32 0.0, %v674
        %v676 = vpop.f32.mrf.mxu0
        %v677 = vpop.f32.mrf.mxu0
        %v678 = vadd.f32 0.0, %v677
        %v679 = vpop.f32.mrf.mxu0
        %680 = vdwg.mxu0
        %v681 = vld [vmem:[#allocation2] sm:$0xff]
        %v682 = vld [vmem:[#allocation2 + $0x8] sm:$0xff]
        %v683 = vld [vmem:[#allocation2 + $0x10] sm:$0xff]
        %v684 = vld [vmem:[#allocation2 + $0x18] sm:$0xff]
        %v685 = vld [vmem:[#allocation2 + $0x20] sm:$0xff]
        %v686 = vld [vmem:[#allocation2 + $0x28] sm:$0xff]
        %v687 = vld [vmem:[#allocation2 + $0x30] sm:$0xff]
        %v688 = vld [vmem:[#allocation2 + $0x38] sm:$0xff]
        %v689 = vld [vmem:[#allocation2 + $0x40] sm:$0xff]
        %v690 = vld [vmem:[#allocation2 + $0x48] sm:$0xff]
        %v691 = vld [vmem:[#allocation2 + $0x50] sm:$0xff]
        %v692 = vld [vmem:[#allocation2 + $0x58] sm:$0xff]
        %v693 = vld [vmem:[#allocation2 + $0x60] sm:$0xff]
        %v694 = vld [vmem:[#allocation2 + $0x68] sm:$0xff]
        %v695 = vld [vmem:[#allocation2 + $0x70] sm:$0xff]
        %v696 = vld [vmem:[#allocation2 + $0x78] sm:$0xff]
        %v697 = vld [vmem:[#allocation2 + $0x80] sm:$0xff]
        %v698 = vld [vmem:[#allocation2 + $0x88] sm:$0xff]
        %v699 = vld [vmem:[#allocation2 + $0x90] sm:$0xff]
        %v700 = vld [vmem:[#allocation2 + $0x98] sm:$0xff]
        %v701 = vld [vmem:[#allocation2 + $0xa0] sm:$0xff]
        %v702 = vld [vmem:[#allocation2 + $0xa8] sm:$0xff]
        %v703 = vld [vmem:[#allocation2 + $0xb0] sm:$0xff]
        %v704 = vld [vmem:[#allocation2 + $0xb8] sm:$0xff]
        %v705 = vld [vmem:[#allocation2 + $0xc0] sm:$0xff]
        %v706 = vld [vmem:[#allocation2 + $0xc8] sm:$0xff]
        %v707 = vld [vmem:[#allocation2 + $0xd0] sm:$0xff]
        %v708 = vld [vmem:[#allocation2 + $0xd8] sm:$0xff]
        %v709 = vld [vmem:[#allocation2 + $0xe0] sm:$0xff]
        %v710 = vld [vmem:[#allocation2 + $0xe8] sm:$0xff]
        %v711 = vld [vmem:[#allocation2 + $0xf0] sm:$0xff]
        %v712 = vld [vmem:[#allocation2 + $0xf8] sm:$0xff]
        %v713 = vld [vmem:[%s244] sm:$0xff]
        %v714 = vld [vmem:[%s244 + $0x8] sm:$0xff]
        %v715 = vld [vmem:[%s244 + $0x10] sm:$0xff]
        %v716 = vld [vmem:[%s244 + $0x18] sm:$0xff]
        %v717 = vld [vmem:[%s244 + $0x20] sm:$0xff]
        %v718 = vld [vmem:[%s244 + $0x28] sm:$0xff]
        %v719 = vld [vmem:[%s244 + $0x30] sm:$0xff]
        %v720 = vld [vmem:[%s244 + $0x38] sm:$0xff]
        %v721 = vld [vmem:[%s244 + $0x40] sm:$0xff]
        %v722 = vld [vmem:[%s244 + $0x48] sm:$0xff]
        %v723 = vld [vmem:[%s244 + $0x50] sm:$0xff]
        %v724 = vld [vmem:[%s244 + $0x58] sm:$0xff]
        %v725 = vld [vmem:[%s244 + $0x60] sm:$0xff]
        %v726 = vld [vmem:[%s244 + $0x68] sm:$0xff]
        %v727 = vld [vmem:[%s244 + $0x70] sm:$0xff]
        %v728 = vld [vmem:[%s244 + $0x78] sm:$0xff]
        %v729 = vld [vmem:[%s244 + $0x80] sm:$0xff]
        %v730 = vld [vmem:[%s244 + $0x88] sm:$0xff]
        %v731 = vld [vmem:[%s244 + $0x90] sm:$0xff]
        %v732 = vld [vmem:[%s244 + $0x98] sm:$0xff]
        %v733 = vld [vmem:[%s244 + $0xa0] sm:$0xff]
        %v734 = vld [vmem:[%s244 + $0xa8] sm:$0xff]
        %v735 = vld [vmem:[%s244 + $0xb0] sm:$0xff]
        %v736 = vld [vmem:[%s244 + $0xb8] sm:$0xff]
        %v737 = vld [vmem:[%s244 + $0xc0] sm:$0xff]
        %v738 = vld [vmem:[%s244 + $0xc8] sm:$0xff]
        %v739 = vld [vmem:[%s244 + $0xd0] sm:$0xff]
        %v740 = vld [vmem:[%s244 + $0xd8] sm:$0xff]
        %v741 = vld [vmem:[%s244 + $0xe0] sm:$0xff]
        %v742 = vld [vmem:[%s244 + $0xe8] sm:$0xff]
        %v743 = vld [vmem:[%s244 + $0xf0] sm:$0xff]
        %v744 = vld [vmem:[%s244 + $0xf8] sm:$0xff]
        %v745 = vpack.c.bf16 %v558, %v555
        %v746 = vpack.c.bf16 %v566, %v563
        %v747 = vpack.c.bf16 %v574, %v571
        %v748 = vpack.c.bf16 %v582, %v579
        %v749 = vpack.c.bf16 %v590, %v587
        %v750 = vpack.c.bf16 %v598, %v595
        %v751 = vpack.c.bf16 %v606, %v603
        %v752 = vpack.c.bf16 %v614, %v611
        %v753 = vpack.c.bf16 %v622, %v619
        %v754 = vpack.c.bf16 %v630, %v627
        %v755 = vpack.c.bf16 %v638, %v635
        %v756 = vpack.c.bf16 %v646, %v643
        %v757 = vpack.c.bf16 %v654, %v651
        %v758 = vpack.c.bf16 %v662, %v659
        %v759 = vpack.c.bf16 %v670, %v667
        %v760 = vpack.c.bf16 %v678, %v675
        %v793 = vunpack.c.l.b16 %v713
        %v794 = vunpack.c.h.b16 %v713
        %v795 = vunpack.c.l.b16 %v714
        %v796 = vunpack.c.h.b16 %v714
        %v797 = vunpack.c.l.b16 %v715
        %v798 = vunpack.c.h.b16 %v715
        %v799 = vunpack.c.l.b16 %v716
        %v800 = vunpack.c.h.b16 %v716
        %v801 = vunpack.c.l.b16 %v717
        %v802 = vunpack.c.h.b16 %v717
        %v803 = vunpack.c.l.b16 %v718
        %v804 = vunpack.c.h.b16 %v718
        %v805 = vunpack.c.l.b16 %v719
        %v806 = vunpack.c.h.b16 %v719
        %v807 = vunpack.c.l.b16 %v720
        %v808 = vunpack.c.h.b16 %v720
        %v809 = vunpack.c.l.b16 %v721
        %v810 = vunpack.c.h.b16 %v721
        %v811 = vunpack.c.l.b16 %v722
        %v812 = vunpack.c.h.b16 %v722
        %v813 = vunpack.c.l.b16 %v723
        %v814 = vunpack.c.h.b16 %v723
        %v815 = vunpack.c.l.b16 %v724
        %v816 = vunpack.c.h.b16 %v724
        %v817 = vunpack.c.l.b16 %v725
        %v818 = vunpack.c.h.b16 %v725
        %v819 = vunpack.c.l.b16 %v726
        %v820 = vunpack.c.h.b16 %v726
        %v821 = vunpack.c.l.b16 %v727
        %v822 = vunpack.c.h.b16 %v727
        %v823 = vunpack.c.l.b16 %v728
        %v824 = vunpack.c.h.b16 %v728
        %v825 = vunpack.c.l.b16 %v729
        %v826 = vunpack.c.h.b16 %v729
        %v827 = vunpack.c.l.b16 %v730
        %v828 = vunpack.c.h.b16 %v730
        %v829 = vunpack.c.l.b16 %v731
        %v830 = vunpack.c.h.b16 %v731
        %v831 = vunpack.c.l.b16 %v732
        %v832 = vunpack.c.h.b16 %v732
        %v833 = vunpack.c.l.b16 %v733
        %v834 = vunpack.c.h.b16 %v733
        %v835 = vunpack.c.l.b16 %v734
        %v836 = vunpack.c.h.b16 %v734
        %v837 = vunpack.c.l.b16 %v735
        %v838 = vunpack.c.h.b16 %v735
        %v839 = vunpack.c.l.b16 %v736
        %v840 = vunpack.c.h.b16 %v736
        %v841 = vunpack.c.l.b16 %v737
        %v842 = vunpack.c.h.b16 %v737
        %v843 = vunpack.c.l.b16 %v738
        %v844 = vunpack.c.h.b16 %v738
        %v845 = vunpack.c.l.b16 %v739
        %v846 = vunpack.c.h.b16 %v739
        %v847 = vunpack.c.l.b16 %v740
        %v848 = vunpack.c.h.b16 %v740
        %v849 = vunpack.c.l.b16 %v741
        %v850 = vunpack.c.h.b16 %v741
        %v851 = vunpack.c.l.b16 %v742
        %v852 = vunpack.c.h.b16 %v742
        %v853 = vunpack.c.l.b16 %v743
        %v854 = vunpack.c.h.b16 %v743
        %v855 = vunpack.c.l.b16 %v744
        %v856 = vunpack.c.h.b16 %v744
        %v857 = vpack.c.b16 %v795, %v793
        %v858 = vpack.c.b16 %v796, %v794
        %v859 = vpack.c.b16 %v799, %v797
        %v860 = vpack.c.b16 %v800, %v798
        %v861 = vpack.c.b16 %v803, %v801
        %v862 = vpack.c.b16 %v804, %v802
        %v863 = vpack.c.b16 %v807, %v805
        %v864 = vpack.c.b16 %v808, %v806
        %v865 = vpack.c.b16 %v811, %v809
        %v866 = vpack.c.b16 %v812, %v810
        %v867 = vpack.c.b16 %v815, %v813
        %v868 = vpack.c.b16 %v816, %v814
        %v869 = vpack.c.b16 %v819, %v817
        %v870 = vpack.c.b16 %v820, %v818
        %v871 = vpack.c.b16 %v823, %v821
        %v872 = vpack.c.b16 %v824, %v822
        %v873 = vpack.c.b16 %v827, %v825
        %v874 = vpack.c.b16 %v828, %v826
        %v875 = vpack.c.b16 %v831, %v829
        %v876 = vpack.c.b16 %v832, %v830
        %v877 = vpack.c.b16 %v835, %v833
        %v878 = vpack.c.b16 %v836, %v834
        %v879 = vpack.c.b16 %v839, %v837
        %v880 = vpack.c.b16 %v840, %v838
        %v881 = vpack.c.b16 %v843, %v841
        %v882 = vpack.c.b16 %v844, %v842
        %v883 = vpack.c.b16 %v847, %v845
        %v884 = vpack.c.b16 %v848, %v846
        %v885 = vpack.c.b16 %v851, %v849
        %v886 = vpack.c.b16 %v852, %v850
        %v887 = vpack.c.b16 %v855, %v853
        %v888 = vpack.c.b16 %v856, %v854
        %921 = vmatprep.subr.bf16.mxu0 0
        %922 = vmatpush1.bf16.msra.mxu0 %v752
        %923 = vmatprep.subr.bf16.mxu0 0
        %924 = vmatpush1.bf16.msra.mxu0 %v751
        %925 = vmatprep.subr.bf16.mxu0 0
        %926 = vmatpush1.bf16.msra.mxu0 %v750
        %927 = vmatprep.subr.bf16.mxu0 0
        %928 = vmatpush1.bf16.msra.mxu0 %v749
        %929 = vmatprep.subr.bf16.mxu0 0
        %930 = vmatpush1.bf16.msra.mxu0 %v748
        %931 = vmatprep.subr.bf16.mxu0 0
        %932 = vmatpush1.bf16.msra.mxu0 %v747
        %933 = vmatprep.subr.bf16.mxu0 0
        %934 = vmatpush1.bf16.msra.mxu0 %v746
        %935 = vmatprep.subr.bf16.mxu0 0
        %936 = vmatpush1.bf16.msra.mxu0 %v745
        %937 = vmatprep.subr.bf16.mxu0 0
        %938 = vmatpush2.bf16.msra.mxu0 %v760
        %939 = vmatprep.subr.bf16.mxu0 0
        %940 = vmatpush2.bf16.msra.mxu0 %v759
        %941 = vmatprep.subr.bf16.mxu0 0
        %942 = vmatpush2.bf16.msra.mxu0 %v758
        %943 = vmatprep.subr.bf16.mxu0 0
        %944 = vmatpush2.bf16.msra.mxu0 %v757
        %945 = vmatprep.subr.bf16.mxu0 0
        %946 = vmatpush2.bf16.msra.mxu0 %v756
        %947 = vmatprep.subr.bf16.mxu0 0
        %948 = vmatpush2.bf16.msra.mxu0 %v755
        %949 = vmatprep.subr.bf16.mxu0 0
        %950 = vmatpush2.bf16.msra.mxu0 %v754
        %951 = vmatprep.subr.bf16.mxu0 0
        %952 = vmatpush2.bf16.msra.mxu0 %v753
        %953 = vmatprep.mubr.bf16.mxu0 %v858
        %954 = vmatmul.mubr.bf16.gmra.mxu0 %v857
        %v955 = vpop.f32.mrf.mxu0
        %v956 = vadd.f32 0.0, %v955
        %v957 = vpop.f32.mrf.mxu0
        %v958 = vpop.f32.mrf.mxu0
        %v959 = vadd.f32 0.0, %v958
        %v960 = vpop.f32.mrf.mxu0
        %961 = vmatprep.mubr.bf16.mxu0 %v860
        %962 = vmatmul.mubr.bf16.gmra.mxu0 %v859
        %v963 = vpop.f32.mrf.mxu0
        %v964 = vadd.f32 0.0, %v963
        %v965 = vpop.f32.mrf.mxu0
        %v966 = vpop.f32.mrf.mxu0
        %v967 = vadd.f32 0.0, %v966
        %v968 = vpop.f32.mrf.mxu0
        %969 = vmatprep.mubr.bf16.mxu0 %v862
        %970 = vmatmul.mubr.bf16.gmra.mxu0 %v861
        %v971 = vpop.f32.mrf.mxu0
        %v972 = vadd.f32 0.0, %v971
        %v973 = vpop.f32.mrf.mxu0
        %v974 = vpop.f32.mrf.mxu0
        %v975 = vadd.f32 0.0, %v974
        %v976 = vpop.f32.mrf.mxu0
        %977 = vmatprep.mubr.bf16.mxu0 %v864
        %978 = vmatmul.mubr.bf16.gmra.mxu0 %v863
        %v979 = vpop.f32.mrf.mxu0
        %v980 = vadd.f32 0.0, %v979
        %v981 = vpop.f32.mrf.mxu0
        %v982 = vpop.f32.mrf.mxu0
        %v983 = vadd.f32 0.0, %v982
        %v984 = vpop.f32.mrf.mxu0
        %985 = vmatprep.mubr.bf16.mxu0 %v866
        %986 = vmatmul.mubr.bf16.gmra.mxu0 %v865
        %v987 = vpop.f32.mrf.mxu0
        %v988 = vadd.f32 0.0, %v987
        %v989 = vpop.f32.mrf.mxu0
        %v990 = vpop.f32.mrf.mxu0
        %v991 = vadd.f32 0.0, %v990
        %v992 = vpop.f32.mrf.mxu0
        %993 = vmatprep.mubr.bf16.mxu0 %v868
        %994 = vmatmul.mubr.bf16.gmra.mxu0 %v867
        %v995 = vpop.f32.mrf.mxu0
        %v996 = vadd.f32 0.0, %v995
        %v997 = vpop.f32.mrf.mxu0
        %v998 = vpop.f32.mrf.mxu0
        %v999 = vadd.f32 0.0, %v998
        %v1000 = vpop.f32.mrf.mxu0
        %1001 = vmatprep.mubr.bf16.mxu0 %v870
        %1002 = vmatmul.mubr.bf16.gmra.mxu0 %v869
        %v1003 = vpop.f32.mrf.mxu0
        %v1004 = vadd.f32 0.0, %v1003
        %v1005 = vpop.f32.mrf.mxu0
        %v1006 = vpop.f32.mrf.mxu0
        %v1007 = vadd.f32 0.0, %v1006
        %v1008 = vpop.f32.mrf.mxu0
        %1009 = vmatprep.mubr.bf16.mxu0 %v872
        %1010 = vmatmul.mubr.bf16.gmra.mxu0 %v871
        %v1011 = vpop.f32.mrf.mxu0
        %v1012 = vadd.f32 0.0, %v1011
        %v1013 = vpop.f32.mrf.mxu0
        %v1014 = vpop.f32.mrf.mxu0
        %v1015 = vadd.f32 0.0, %v1014
        %v1016 = vpop.f32.mrf.mxu0
        %1017 = vmatprep.mubr.bf16.mxu0 %v874
        %1018 = vmatmul.mubr.bf16.gmra.mxu0 %v873
        %v1019 = vpop.f32.mrf.mxu0
        %v1020 = vadd.f32 0.0, %v1019
        %v1021 = vpop.f32.mrf.mxu0
        %v1022 = vpop.f32.mrf.mxu0
        %v1023 = vadd.f32 0.0, %v1022
        %v1024 = vpop.f32.mrf.mxu0
        %1025 = vmatprep.mubr.bf16.mxu0 %v876
        %1026 = vmatmul.mubr.bf16.gmra.mxu0 %v875
        %v1027 = vpop.f32.mrf.mxu0
        %v1028 = vadd.f32 0.0, %v1027
        %v1029 = vpop.f32.mrf.mxu0
        %v1030 = vpop.f32.mrf.mxu0
        %v1031 = vadd.f32 0.0, %v1030
        %v1032 = vpop.f32.mrf.mxu0
        %1033 = vmatprep.mubr.bf16.mxu0 %v878
        %1034 = vmatmul.mubr.bf16.gmra.mxu0 %v877
        %v1035 = vpop.f32.mrf.mxu0
        %v1036 = vadd.f32 0.0, %v1035
        %v1037 = vpop.f32.mrf.mxu0
        %v1038 = vpop.f32.mrf.mxu0
        %v1039 = vadd.f32 0.0, %v1038
        %v1040 = vpop.f32.mrf.mxu0
        %1041 = vmatprep.mubr.bf16.mxu0 %v880
        %1042 = vmatmul.mubr.bf16.gmra.mxu0 %v879
        %v1043 = vpop.f32.mrf.mxu0
        %v1044 = vadd.f32 0.0, %v1043
        %v1045 = vpop.f32.mrf.mxu0
        %v1046 = vpop.f32.mrf.mxu0
        %v1047 = vadd.f32 0.0, %v1046
        %v1048 = vpop.f32.mrf.mxu0
        %1049 = vmatprep.mubr.bf16.mxu0 %v882
        %1050 = vmatmul.mubr.bf16.gmra.mxu0 %v881
        %v1051 = vpop.f32.mrf.mxu0
        %v1052 = vadd.f32 0.0, %v1051
        %v1053 = vpop.f32.mrf.mxu0
        %v1054 = vpop.f32.mrf.mxu0
        %v1055 = vadd.f32 0.0, %v1054
        %v1056 = vpop.f32.mrf.mxu0
        %1057 = vmatprep.mubr.bf16.mxu0 %v884
        %1058 = vmatmul.mubr.bf16.gmra.mxu0 %v883
        %v1059 = vpop.f32.mrf.mxu0
        %v1060 = vadd.f32 0.0, %v1059
        %v1061 = vpop.f32.mrf.mxu0
        %v1062 = vpop.f32.mrf.mxu0
        %v1063 = vadd.f32 0.0, %v1062
        %v1064 = vpop.f32.mrf.mxu0
        %1065 = vmatprep.mubr.bf16.mxu0 %v886
        %1066 = vmatmul.mubr.bf16.gmra.mxu0 %v885
        %v1067 = vpop.f32.mrf.mxu0
        %v1068 = vadd.f32 0.0, %v1067
        %v1069 = vpop.f32.mrf.mxu0
        %v1070 = vpop.f32.mrf.mxu0
        %v1071 = vadd.f32 0.0, %v1070
        %v1072 = vpop.f32.mrf.mxu0
        %1073 = vmatprep.mubr.bf16.mxu0 %v888
        %1074 = vmatmul.mubr.bf16.gmra.mxu0 %v887
        %v1075 = vpop.f32.mrf.mxu0
        %v1076 = vadd.f32 0.0, %v1075
        %v1077 = vpop.f32.mrf.mxu0
        %v1078 = vpop.f32.mrf.mxu0
        %v1079 = vadd.f32 0.0, %v1078
        %v1080 = vpop.f32.mrf.mxu0
        %1081 = vdwg.mxu0
        %v1082 = vadd.f32 %v681, %v956
        %v1083 = vadd.f32 %v682, %v959
        %v1084 = vadd.f32 %v683, %v964
        %v1085 = vadd.f32 %v684, %v967
        %v1086 = vadd.f32 %v685, %v972
        %v1087 = vadd.f32 %v686, %v975
        %v1088 = vadd.f32 %v687, %v980
        %v1089 = vadd.f32 %v688, %v983
        %v1090 = vadd.f32 %v689, %v988
        %v1091 = vadd.f32 %v690, %v991
        %v1092 = vadd.f32 %v691, %v996
        %v1093 = vadd.f32 %v692, %v999
        %v1094 = vadd.f32 %v693, %v1004
        %v1095 = vadd.f32 %v694, %v1007
        %v1096 = vadd.f32 %v695, %v1012
        %v1097 = vadd.f32 %v696, %v1015
        %v1098 = vadd.f32 %v697, %v1020
        %v1099 = vadd.f32 %v698, %v1023
        %v1100 = vadd.f32 %v699, %v1028
        %v1101 = vadd.f32 %v700, %v1031
        %v1102 = vadd.f32 %v701, %v1036
        %v1103 = vadd.f32 %v702, %v1039
        %v1104 = vadd.f32 %v703, %v1044
        %v1105 = vadd.f32 %v704, %v1047
        %v1106 = vadd.f32 %v705, %v1052
        %v1107 = vadd.f32 %v706, %v1055
        %v1108 = vadd.f32 %v707, %v1060
        %v1109 = vadd.f32 %v708, %v1063
        %v1110 = vadd.f32 %v709, %v1068
        %v1111 = vadd.f32 %v710, %v1071
        %v1112 = vadd.f32 %v711, %v1076
        %v1113 = vadd.f32 %v712, %v1079
        %1114 = vst [vmem:[#allocation2] sm:$0xff] %v1082
        %1115 = vst [vmem:[#allocation2 + $0x8] sm:$0xff] %v1083
        %1116 = vst [vmem:[#allocation2 + $0x10] sm:$0xff] %v1084
        %1117 = vst [vmem:[#allocation2 + $0x18] sm:$0xff] %v1085
        %1118 = vst [vmem:[#allocation2 + $0x20] sm:$0xff] %v1086
        %1119 = vst [vmem:[#allocation2 + $0x28] sm:$0xff] %v1087
        %1120 = vst [vmem:[#allocation2 + $0x30] sm:$0xff] %v1088
        %1121 = vst [vmem:[#allocation2 + $0x38] sm:$0xff] %v1089
        %1122 = vst [vmem:[#allocation2 + $0x40] sm:$0xff] %v1090
        %1123 = vst [vmem:[#allocation2 + $0x48] sm:$0xff] %v1091
        %1124 = vst [vmem:[#allocation2 + $0x50] sm:$0xff] %v1092
        %1125 = vst [vmem:[#allocation2 + $0x58] sm:$0xff] %v1093
        %1126 = vst [vmem:[#allocation2 + $0x60] sm:$0xff] %v1094
        %1127 = vst [vmem:[#allocation2 + $0x68] sm:$0xff] %v1095
        %1128 = vst [vmem:[#allocation2 + $0x70] sm:$0xff] %v1096
        %1129 = vst [vmem:[#allocation2 + $0x78] sm:$0xff] %v1097
        %1130 = vst [vmem:[#allocation2 + $0x80] sm:$0xff] %v1098
        %1131 = vst [vmem:[#allocation2 + $0x88] sm:$0xff] %v1099
        %1132 = vst [vmem:[#allocation2 + $0x90] sm:$0xff] %v1100
        %1133 = vst [vmem:[#allocation2 + $0x98] sm:$0xff] %v1101
        %1134 = vst [vmem:[#allocation2 + $0xa0] sm:$0xff] %v1102
        %1135 = vst [vmem:[#allocation2 + $0xa8] sm:$0xff] %v1103
        %1136 = vst [vmem:[#allocation2 + $0xb0] sm:$0xff] %v1104
        %1137 = vst [vmem:[#allocation2 + $0xb8] sm:$0xff] %v1105
        %1138 = vst [vmem:[#allocation2 + $0xc0] sm:$0xff] %v1106
        %1139 = vst [vmem:[#allocation2 + $0xc8] sm:$0xff] %v1107
        %1140 = vst [vmem:[#allocation2 + $0xd0] sm:$0xff] %v1108
        %1141 = vst [vmem:[#allocation2 + $0xd8] sm:$0xff] %v1109
        %1142 = vst [vmem:[#allocation2 + $0xe0] sm:$0xff] %v1110
        %1143 = vst [vmem:[#allocation2 + $0xe8] sm:$0xff] %v1111
        %1144 = vst [vmem:[#allocation2 + $0xf0] sm:$0xff] %v1112
        %1145 = vst [vmem:[#allocation2 + $0xf8] sm:$0xff] %v1113
        %p1146 = scmp.eq.s32.totalorder %s29, 1
        // Predicated region
        $region53: #{tpu_custom_call.1} parent=35 // pred_check
          %p1147 = pneg %p1146
        $region54: #{tpu_custom_call.1} parent=35 // pred_check_branch
          %1149 = sbr.rel (%p1147) target = $region56
        $region55: #{tpu_custom_call.1} parent=35 // pred_region
          %v1150 = vld [vmem:[#allocation2] sm:$0xff]
          %v1151 = vld [vmem:[#allocation2 + $0x8] sm:$0xff]
          %v1152 = vld [vmem:[#allocation2 + $0x10] sm:$0xff]
          %v1153 = vld [vmem:[#allocation2 + $0x18] sm:$0xff]
          %v1154 = vld [vmem:[#allocation2 + $0x20] sm:$0xff]
          %v1155 = vld [vmem:[#allocation2 + $0x28] sm:$0xff]
          %v1156 = vld [vmem:[#allocation2 + $0x30] sm:$0xff]
          %v1157 = vld [vmem:[#allocation2 + $0x38] sm:$0xff]
          %v1158 = vld [vmem:[#allocation2 + $0x40] sm:$0xff]
          %v1159 = vld [vmem:[#allocation2 + $0x48] sm:$0xff]
          %v1160 = vld [vmem:[#allocation2 + $0x50] sm:$0xff]
          %v1161 = vld [vmem:[#allocation2 + $0x58] sm:$0xff]
          %v1162 = vld [vmem:[#allocation2 + $0x60] sm:$0xff]
          %v1163 = vld [vmem:[#allocation2 + $0x68] sm:$0xff]
          %v1164 = vld [vmem:[#allocation2 + $0x70] sm:$0xff]
          %v1165 = vld [vmem:[#allocation2 + $0x78] sm:$0xff]
          %v1166 = vld [vmem:[#allocation2 + $0x80] sm:$0xff]
          %v1167 = vld [vmem:[#allocation2 + $0x88] sm:$0xff]
          %v1168 = vld [vmem:[#allocation2 + $0x90] sm:$0xff]
          %v1169 = vld [vmem:[#allocation2 + $0x98] sm:$0xff]
          %v1170 = vld [vmem:[#allocation2 + $0xa0] sm:$0xff]
          %v1171 = vld [vmem:[#allocation2 + $0xa8] sm:$0xff]
          %v1172 = vld [vmem:[#allocation2 + $0xb0] sm:$0xff]
          %v1173 = vld [vmem:[#allocation2 + $0xb8] sm:$0xff]
          %v1174 = vld [vmem:[#allocation2 + $0xc0] sm:$0xff]
          %v1175 = vld [vmem:[#allocation2 + $0xc8] sm:$0xff]
          %v1176 = vld [vmem:[#allocation2 + $0xd0] sm:$0xff]
          %v1177 = vld [vmem:[#allocation2 + $0xd8] sm:$0xff]
          %v1178 = vld [vmem:[#allocation2 + $0xe0] sm:$0xff]
          %v1179 = vld [vmem:[#allocation2 + $0xe8] sm:$0xff]
          %v1180 = vld [vmem:[#allocation2 + $0xf0] sm:$0xff]
          %v1181 = vld [vmem:[#allocation2 + $0xf8] sm:$0xff]
          %v1182 = vld [vmem:[%s3] sm:$0x1]
          %v1184 = vlaneseq
          %v1185 = vshrl.u32 %v1184, 7
          %v1186 = vsub.s32 0, %v1185
          %v1187 = vrot.slane %v1182, %v1186
          %v1189 = vadd.f32 %v1150, %v1187
          %v1190 = vadd.f32 %v1151, %v1187
          %v1191 = vadd.f32 %v1152, %v1187
          %v1192 = vadd.f32 %v1153, %v1187
          %v1193 = vadd.f32 %v1154, %v1187
          %v1194 = vadd.f32 %v1155, %v1187
          %v1195 = vadd.f32 %v1156, %v1187
          %v1196 = vadd.f32 %v1157, %v1187
          %v1197 = vadd.f32 %v1158, %v1187
          %v1198 = vadd.f32 %v1159, %v1187
          %v1199 = vadd.f32 %v1160, %v1187
          %v1200 = vadd.f32 %v1161, %v1187
          %v1201 = vadd.f32 %v1162, %v1187
          %v1202 = vadd.f32 %v1163, %v1187
          %v1203 = vadd.f32 %v1164, %v1187
          %v1204 = vadd.f32 %v1165, %v1187
          %v1205 = vadd.f32 %v1166, %v1187
          %v1206 = vadd.f32 %v1167, %v1187
          %v1207 = vadd.f32 %v1168, %v1187
          %v1208 = vadd.f32 %v1169, %v1187
          %v1209 = vadd.f32 %v1170, %v1187
          %v1210 = vadd.f32 %v1171, %v1187
          %v1211 = vadd.f32 %v1172, %v1187
          %v1212 = vadd.f32 %v1173, %v1187
          %v1213 = vadd.f32 %v1174, %v1187
          %v1214 = vadd.f32 %v1175, %v1187
          %v1215 = vadd.f32 %v1176, %v1187
          %v1216 = vadd.f32 %v1177, %v1187
          %v1217 = vadd.f32 %v1178, %v1187
          %v1218 = vadd.f32 %v1179, %v1187
          %v1219 = vadd.f32 %v1180, %v1187
          %v1220 = vadd.f32 %v1181, %v1187
          %1221 = vst [vmem:[%s286] sm:$0xff] %v1189
          %1222 = vst [vmem:[%s286 + $0x8] sm:$0xff] %v1190
          %1223 = vst [vmem:[%s286 + $0x10] sm:$0xff] %v1191
          %1224 = vst [vmem:[%s286 + $0x18] sm:$0xff] %v1192
          %1225 = vst [vmem:[%s286 + $0x20] sm:$0xff] %v1193
          %1226 = vst [vmem:[%s286 + $0x28] sm:$0xff] %v1194
          %1227 = vst [vmem:[%s286 + $0x30] sm:$0xff] %v1195
          %1228 = vst [vmem:[%s286 + $0x38] sm:$0xff] %v1196
          %1229 = vst [vmem:[%s286 + $0x40] sm:$0xff] %v1197
          %1230 = vst [vmem:[%s286 + $0x48] sm:$0xff] %v1198
          %1231 = vst [vmem:[%s286 + $0x50] sm:$0xff] %v1199
          %1232 = vst [vmem:[%s286 + $0x58] sm:$0xff] %v1200
          %1233 = vst [vmem:[%s286 + $0x60] sm:$0xff] %v1201
          %1234 = vst [vmem:[%s286 + $0x68] sm:$0xff] %v1202
          %1235 = vst [vmem:[%s286 + $0x70] sm:$0xff] %v1203
          %1236 = vst [vmem:[%s286 + $0x78] sm:$0xff] %v1204
          %1237 = vst [vmem:[%s286 + $0x80] sm:$0xff] %v1205
          %1238 = vst [vmem:[%s286 + $0x88] sm:$0xff] %v1206
          %1239 = vst [vmem:[%s286 + $0x90] sm:$0xff] %v1207
          %1240 = vst [vmem:[%s286 + $0x98] sm:$0xff] %v1208
          %1241 = vst [vmem:[%s286 + $0xa0] sm:$0xff] %v1209
          %1242 = vst [vmem:[%s286 + $0xa8] sm:$0xff] %v1210
          %1243 = vst [vmem:[%s286 + $0xb0] sm:$0xff] %v1211
          %1244 = vst [vmem:[%s286 + $0xb8] sm:$0xff] %v1212
          %1245 = vst [vmem:[%s286 + $0xc0] sm:$0xff] %v1213
          %1246 = vst [vmem:[%s286 + $0xc8] sm:$0xff] %v1214
          %1247 = vst [vmem:[%s286 + $0xd0] sm:$0xff] %v1215
          %1248 = vst [vmem:[%s286 + $0xd8] sm:$0xff] %v1216
          %1249 = vst [vmem:[%s286 + $0xe0] sm:$0xff] %v1217
          %1250 = vst [vmem:[%s286 + $0xe8] sm:$0xff] %v1218
          %1251 = vst [vmem:[%s286 + $0xf0] sm:$0xff] %v1219
          %1252 = vst [vmem:[%s286 + $0xf8] sm:$0xff] %v1220
        $region56: #{tpu_custom_call.1} parent=35 // pred_fallthru
          _
        %s1253 = sand.u32 %s140, 1
        %s1254 = scalar_lea.sflag [#allocation5], %s1253
        %s1255 = sand.u32 %s140, 1
        %s1256 = smul.addr %s1255, 256
        %s1257 = scalar_lea.vmem [#allocation9], %s1256
        // Predicated region
        $region57: #{tpu_custom_call.1} parent=35 // pred_check
          %p1258 = pneg %p150
        $region58: #{tpu_custom_call.1} parent=35 // pred_check_branch
          %1260 = sbr.rel (%p1258) target = $region60
        $region59: #{tpu_custom_call.1} parent=35 // pred_region
          %s1261 = smul.u32 32, %s28
          %s1263 = ssub.s32 4096, 4096
          %1264 = vsyncadd %s1254, %s1263
          %s1265 = smul.addr %s1261, 128
          %s1266 = scalar_lea.hbm %s4, %s1265
          %s1267 = sshll.u32 %s1257, 4
          %s1268 = int_to_ptr.vmem [resolvable:$true] %s1267
          %1273 = dma.vmem_to_hbm [thread:$0]  %s1268, 4096, %s1266, %s1254, 128, 128, 8
        $region60: #{tpu_custom_call.1} parent=35 // pred_fallthru
          _
      $region36: #{tpu_custom_call.1} parent=5 // pred_fallthru
        _
      %p1274 = scmp.le.s32.totalorder 2, %s19
      // Predicated region
      $region61: #{tpu_custom_call.1} parent=5 // pred_check
        %p1275 = pneg %p1274
      $region62: #{tpu_custom_call.1} parent=5 // pred_check_branch
        %1277 = sbr.rel (%p1275) target = $region64
      $region63: #{tpu_custom_call.1} parent=5 // pred_region
        %s1278 = ssub.s32 %s19, 2
        // Predicated region
        $region65: #{tpu_custom_call.1} parent=63 // pred_check
          %p1279 = pneg %p156
        $region66: #{tpu_custom_call.1} parent=63 // pred_check_branch
          %1281 = sbr.rel (%p1279) target = $region68
        $region67: #{tpu_custom_call.1} parent=63 // pred_region
          %s1282 = sand.u32 %s141, 1
          %s1283 = scalar_lea.sflag [#allocation5], %s1282
          %s1284 = sand.u32 %s141, 1
          %s1285 = smul.addr %s1284, 256
          %s1286 = scalar_lea.vmem [#allocation9], %s1285
          %1287 = dma.done %s1283, 4096
        $region68: #{tpu_custom_call.1} parent=63 // pred_fallthru
          _
      $region64: #{tpu_custom_call.1} parent=5 // pred_fallthru
        _
    $region6: #{tpu_custom_call.1} parent=1 // loop_footer
      %s23 = sadd.s32 1, %s19
    $region7: #{tpu_custom_call.1} parent=1 // loop_footer_branch
      %18 = sbr.rel target = $region3
    $region8: #{tpu_custom_call.1} parent=1 // loop_exit
      _
    %1288 = vsyncpa [#allocation4], 1
    %s1289 = scalar_lea.sflag [#allocation4], 1
    %1290 = vsyncpa %s1289, 1
    %1291 = vsyncpa [#allocation7], 1
    %s1292 = scalar_lea.sflag [#allocation7], 1
    %1293 = vsyncpa %s1292, 1
    %1294 = vsyncpa [#allocation5], 1
    %s1295 = scalar_lea.sflag [#allocation5], 1
    %1296 = vsyncpa %s1295, 1

</llo_original>
